<compile_context>
chip_gen: v5e
topology: v5e:2x2
jax: 0.10.0
libtpu: 0.0.40
codegen_flags: <defaults>
</compile_context>

<pallas_src>
import functools

import jax
import jax.numpy as jnp
from jax.experimental import pallas as pl
from jax.experimental.pallas import tpu as pltpu


# ---------------------------------------------------------------------------
# Numerically stable sigmoid:  1 / (1 + exp(u - d*x)) == sigmoid(d*x - u).
# ---------------------------------------------------------------------------
def _stable_sigmoid(z):
    e = jnp.exp(-jnp.abs(z))                    # EUP; argument <= 0, never overflows
    r = pl.reciprocal(1.0 + e, approx=True)     # EUP approx rcp (VPU slot stays free)
    return jnp.where(z >= 0, r, e * r)


# ---------------------------------------------------------------------------
# Prologue: S = sigmoid(d*x - u), one mem-bound pass over x, emitted in bf16.
# ---------------------------------------------------------------------------
def _sigmoid_kernel(x_ref, s_ref, *, u, d):
    z = d * x_ref[...].astype(jnp.float32) - u
    s_ref[...] = _stable_sigmoid(z).astype(s_ref.dtype)


# ---------------------------------------------------------------------------
# Main kernels: one (i, j, k) grid step of  out = A @ S - x.
#   a_ref : (tm, tk) bf16 tile of A        block (i, k)
#   s_ref : (tk, tn) bf16 tile of S        block (k, j)
#   x_ref : (tm, tn) tile of x (-x term)   block (i, j)  (constant over k -> no re-DMA)
#   o_ref : (tm, tn) output tile           block (i, j)  (VMEM-resident across k)
# ---------------------------------------------------------------------------
def _mm_kernel_f32_out(a_ref, s_ref, x_ref, o_ref):
    # o_ref is f32 and its block index does not depend on k, so it doubles as
    # the accumulator: init to -x at k == 0, then accumulate A @ S into it.
    @pl.when(pl.program_id(2) == 0)
    def _():
        o_ref[...] = -x_ref[...].astype(jnp.float32)

    o_ref[...] += jnp.dot(a_ref[...], s_ref[...],
                          preferred_element_type=jnp.float32)


def _mm_kernel_scratch(a_ref, s_ref, x_ref, o_ref, acc_ref):
    k = pl.program_id(2)

    @pl.when(k == 0)
    def _():
        acc_ref[...] = jnp.zeros_like(acc_ref)

    acc_ref[...] += jnp.dot(a_ref[...], s_ref[...],
                            preferred_element_type=jnp.float32)

    @pl.when(k == pl.num_programs(2) - 1)
    def _():
        o_ref[...] = (acc_ref[...] - x_ref[...].astype(jnp.float32)).astype(o_ref.dtype)


# Fused variants: sigmoid computed in-kernel on the (k, j) x tile. Used when
# N // tm == 1, where each S tile is consumed exactly once so a prologue would
# only add a kernel launch plus an extra HBM round trip of S.
def _fused_kernel_f32_out(a_ref, xk_ref, xi_ref, o_ref, *, u, d):
    @pl.when(pl.program_id(2) == 0)
    def _():
        o_ref[...] = -xi_ref[...].astype(jnp.float32)

    z = d * xk_ref[...].astype(jnp.float32) - u
    s = _stable_sigmoid(z).astype(a_ref.dtype)
    o_ref[...] += jnp.dot(a_ref[...], s, preferred_element_type=jnp.float32)


def _fused_kernel_scratch(a_ref, xk_ref, xi_ref, o_ref, acc_ref, *, u, d):
    k = pl.program_id(2)

    @pl.when(k == 0)
    def _():
        acc_ref[...] = jnp.zeros_like(acc_ref)

    z = d * xk_ref[...].astype(jnp.float32) - u
    s = _stable_sigmoid(z).astype(a_ref.dtype)
    acc_ref[...] += jnp.dot(a_ref[...], s, preferred_element_type=jnp.float32)

    @pl.when(k == pl.num_programs(2) - 1)
    def _():
        o_ref[...] = (acc_ref[...] - xi_ref[...].astype(jnp.float32)).astype(o_ref.dtype)


# ---------------------------------------------------------------------------
# Generation-aware tile / VMEM-limit selection.
# ---------------------------------------------------------------------------
def _pick_tile(dim, candidates, prefer_multiple_blocks=False):
    """Largest candidate that divides `dim` (optionally leaving >= 2 blocks)."""
    if prefer_multiple_blocks:
        for c in candidates:
            if c <= dim and dim % c == 0 and dim // c >= 2:
                return c
    for c in candidates:
        if c <= dim and dim % c == 0:
            return c
    return dim  # whole dimension as one block


def _vmem_capacity_bytes():
    try:
        return int(pltpu.get_tpu_info().vmem_capacity_bytes)
    except Exception:
        return 128 * 1024 * 1024


def _select_tiles(N, M):
    vmem = _vmem_capacity_bytes()
    small_vmem = vmem <= 64 * 1024 * 1024          # v7x: 64 MiB/TC, 2 TensorCores
    if small_vmem:
        # ~310 flop/byte needed; tm=512 / tn=2048 / tk=512 clears it at ~21 MiB
        # of double-buffered VMEM, and >= 2 row blocks feeds both TensorCores.
        tm = _pick_tile(N, (512, 256, 128), prefer_multiple_blocks=True)
        tn = _pick_tile(M, (2048, 1024, 512, 256, 128))
        tk = _pick_tile(N, (512, 256, 128))
        vmem_limit = min(56 * 1024 * 1024, max(vmem - 8 * 1024 * 1024, 32 * 1024 * 1024))
    else:
        # v5e/v6e: single TensorCore, 128 MiB VMEM. Grow tm/tn so per-k-step
        # arithmetic intensity tm*tn/(tm+tn) exceeds v6e's ~650 flop/byte
        # HBM:MXU balance; 256-multiples keep the 256-wide MXU fully fed.
        # tk stays <= 512: it does not reduce A/S HBM traffic, only VMEM.
        tm = _pick_tile(N, (1536, 1024, 512, 256, 128))
        tn = _pick_tile(M, (2048, 1024, 512, 256, 128))
        tk = _pick_tile(N, (512, 256, 128))
        vmem_limit = 96 * 1024 * 1024
    return tm, tn, tk, vmem_limit


# ---------------------------------------------------------------------------
# Dispatch.
# ---------------------------------------------------------------------------
def _dynamics_impl(A_bf, x, *, u, d, out_dtype=None, tm=None, tn=None, tk=None):
    """f = -x + A @ sigmoid(d*x - u).  A_bf: (N, N) bf16, x: (N, M)."""
    N, N2 = A_bf.shape
    N3, M = x.shape
    assert N == N2 == N3, "A must be (N, N) and x (N, M)"
    assert N % 128 == 0 and M % 128 == 0, "N and M must be multiples of 128"
    out_dtype = jnp.dtype(out_dtype) if out_dtype is not None else jnp.dtype(x.dtype)

    a_tm, a_tn, a_tk, vmem_limit = _select_tiles(N, M)
    tm = tm or a_tm
    tn = tn or a_tn
    tk = tk or a_tk

    grid = (N // tm, M // tn, N // tk)
    acc_into_out = out_dtype == jnp.float32

    compiler_params = pltpu.CompilerParams(
        dimension_semantics=("parallel", "parallel", "arbitrary"),
        vmem_limit_bytes=vmem_limit,
    )
    out_shape = jax.ShapeDtypeStruct((N, M), out_dtype)
    a_spec = pl.BlockSpec((tm, tk), lambda i, j, k: (i, k))       # A (bf16)
    xi_spec = pl.BlockSpec((tm, tn), lambda i, j, k: (i, j))      # x (-x term), const over k
    out_spec = pl.BlockSpec((tm, tn), lambda i, j, k: (i, j))
    scratch = [] if acc_into_out else [pltpu.VMEM((tm, tn), jnp.float32)]

    if grid[0] == 1:
        # Single row block: fuse the sigmoid into the matmul kernel.
        kernel = _fused_kernel_f32_out if acc_into_out else _fused_kernel_scratch
        return pl.pallas_call(
            functools.partial(kernel, u=u, d=d),
            out_shape=out_shape,
            grid_spec=pltpu.PrefetchScalarGridSpec(
                num_scalar_prefetch=0,
                grid=grid,
                in_specs=[
                    a_spec,
                    pl.BlockSpec((tk, tn), lambda i, j, k: (k, j)),  # x tile -> sigmoid
                    xi_spec,
                ],
                out_specs=out_spec,
                scratch_shapes=scratch,
            ),
            compiler_params=compiler_params,
        )(A_bf, x, x)

    # ---- Prologue: one pass over x -> S (bf16); sigmoid math stays in f32. ----
    bm = _pick_tile(N, (512, 256, 128))
    bn = _pick_tile(M, (2048, 1024, 512, 256, 128))
    S = pl.pallas_call(
        functools.partial(_sigmoid_kernel, u=u, d=d),
        out_shape=jax.ShapeDtypeStruct((N, M), jnp.bfloat16),
        grid=(N // bm, M // bn),
        in_specs=[pl.BlockSpec((bm, bn), lambda i, j: (i, j))],
        out_specs=pl.BlockSpec((bm, bn), lambda i, j: (i, j)),
        compiler_params=pltpu.CompilerParams(
            dimension_semantics=("parallel", "parallel")),
    )(x)

    # ---- Main matmul with fused -x (output block is the accumulator). ----
    # TODO(synk): on v7x, pipeline_mode=pl.Buffered(1) on the x spec would
    # reclaim its second buffer; left at the default since the v7x tile set
    # already fits the 64 MiB budget with margin.
    kernel = _mm_kernel_f32_out if acc_into_out else _mm_kernel_scratch
    return pl.pallas_call(
        kernel,
        out_shape=out_shape,
        grid_spec=pltpu.PrefetchScalarGridSpec(
            num_scalar_prefetch=0,
            grid=grid,
            in_specs=[
                a_spec,                                          # A (bf16)
                pl.BlockSpec((tk, tn), lambda i, j, k: (k, j)),  # S (bf16)
                xi_spec,                                         # x (-x term)
            ],
            out_specs=out_spec,
            scratch_shapes=scratch,
        ),
        compiler_params=compiler_params,
    )(A_bf, S, x)


def make_neuronal_dynamics(A, u=3.5, d=2.0, out_dtype=None):
    """Cast A to bf16 once and return a jitted per-step dynamics function f(x)."""
    A_bf = jnp.asarray(A).astype(jnp.bfloat16)   # hoisted out of the per-call path
    fn = jax.jit(functools.partial(_dynamics_impl, u=float(u), d=float(d),
                                   out_dtype=out_dtype))
    return lambda x: fn(A_bf, x)


def neuronal_dynamics(A, x, *, u=3.5, d=2.0, out_dtype=None, tm=None, tn=None, tk=None):
    """One-shot wrapper (casts A each call; prefer make_neuronal_dynamics when the
    dynamics are evaluated many times with the same A)."""
    return _dynamics_impl(A.astype(jnp.bfloat16), x, u=float(u), d=float(d),
                          out_dtype=out_dtype, tm=tm, tn=tn, tk=tk)


def _reference(A, x, u=3.5, d=2.0):
    return -x + A @ (1.0 / (1.0 + jnp.exp(u - d * x)))


if __name__ == "__main__":
    key = jax.random.PRNGKey(0)
    kA, kx = jax.random.split(key)

    N, M = 256, 128  # N neurons, M independent state columns
    A = jax.random.normal(kA, (N, N), dtype=jnp.float32) * 0.1
    x = jax.random.normal(kx, (N, M), dtype=jnp.float32)

    ref = _reference(A, x)

    # Module-style usage: A cast to bf16 once, jitted per-step function.
    dyn = make_neuronal_dynamics(A, u=3.5, d=2.0)
    out = jax.block_until_ready(dyn(x))
    assert out.shape == ref.shape and out.dtype == ref.dtype
    # bf16 MXU operands + approx reciprocal: slightly looser tolerance vs f32 ref.
    assert jnp.allclose(out, ref, atol=5e-2, rtol=5e-2)

    # Also exercise the prologue + tiled-matmul path (grid with >1 row block).
    out2 = jax.block_until_ready(
        neuronal_dynamics(A, x, u=3.5, d=2.0, tm=128, tn=128, tk=128))
    assert jnp.allclose(out2, ref, atol=5e-2, rtol=5e-2)

    print("KERNEL_OK")
</pallas_src>

<mosaic_0001>
module attributes {stable_mosaic.version = 11 : i64} {
  func.func @_fused_kernel_f32_out(%arg0: i32, %arg1: i32, %arg2: i32, %arg3: memref<256x256xbf16, #tpu.memory_space<vmem>>, %arg4: memref<256x128xf32, #tpu.memory_space<vmem>>, %arg5: memref<256x128xf32, #tpu.memory_space<vmem>>, %arg6: memref<256x128xf32, #tpu.memory_space<vmem>>) attributes {dimension_semantics = [#tpu.dimension_semantics<parallel>, #tpu.dimension_semantics<parallel>, #tpu.dimension_semantics<arbitrary>], iteration_bounds = array<i64: 1, 1, 1>, scalar_prefetch = 0 : i64, scratch_operands = 0 : i64, tpu.core_type = #tpu.core_type<tc>, window_params = [{transform_indices = @transform_0, window_bounds = array<i64: 256, 256>}, {transform_indices = @transform_1, window_bounds = array<i64: 256, 128>}, {transform_indices = @transform_2, window_bounds = array<i64: 256, 128>}, {transform_indices = @transform_3, window_bounds = array<i64: 256, 128>}]} {
    %c0_i32 = arith.constant 0 : i32
    %0 = arith.cmpi eq, %arg2, %c0_i32 : i32
    %1 = arith.extui %0 : i1 to i32
    %c0_i32_0 = arith.constant 0 : i32
    %2 = arith.cmpi ne, %1, %c0_i32_0 : i32
    scf.if %2 {
      %c0_13 = arith.constant 0 : index
      %c0_14 = arith.constant 0 : index
      %25 = vector.load %arg5[%c0_13, %c0_14] : memref<256x128xf32, #tpu.memory_space<vmem>>, vector<256x128xf32>
      %cst_15 = arith.constant 0.000000e+00 : f32
      %26 = vector.broadcast %cst_15 : f32 to vector<256x128xf32>
      %27 = arith.subf %26, %25 : vector<256x128xf32>
      %c0_16 = arith.constant 0 : index
      %c0_17 = arith.constant 0 : index
      %28 = vector.load %arg6[%c0_16, %c0_17] : memref<256x128xf32, #tpu.memory_space<vmem>>, vector<256x128xf32>
      tpu.vector_store %arg6[%c0_16, %c0_17], %27 {strides = array<i32>} : memref<256x128xf32, #tpu.memory_space<vmem>>, vector<256x128xf32>,
    } else {
    }
    %c0 = arith.constant 0 : index
    %c0_1 = arith.constant 0 : index
    %3 = vector.load %arg4[%c0, %c0_1] : memref<256x128xf32, #tpu.memory_space<vmem>>, vector<256x128xf32>
    %cst = arith.constant 2.000000e+00 : f32
    %4 = vector.broadcast %cst : f32 to vector<256x128xf32>
    %5 = arith.mulf %4, %3 : vector<256x128xf32>
    %cst_2 = arith.constant 3.500000e+00 : f32
    %6 = vector.broadcast %cst_2 : f32 to vector<256x128xf32>
    %7 = arith.subf %5, %6 : vector<256x128xf32>
    %8 = math.absf %7 : vector<256x128xf32>
    %cst_3 = arith.constant 0.000000e+00 : f32
    %9 = vector.broadcast %cst_3 : f32 to vector<256x128xf32>
    %10 = arith.subf %9, %8 : vector<256x128xf32>
    %11 = math.exp %10 : vector<256x128xf32>
    %cst_4 = arith.constant 1.000000e+00 : f32
    %12 = vector.broadcast %cst_4 : f32 to vector<256x128xf32>
    %13 = arith.addf %12, %11 : vector<256x128xf32>
    %14 = tpu.reciprocal %13 {approx = true} : vector<256x128xf32> -> vector<256x128xf32>
    %cst_5 = arith.constant 0.000000e+00 : f32
    %15 = vector.broadcast %cst_5 : f32 to vector<256x128xf32>
    %16 = arith.cmpf oge, %7, %15 : vector<256x128xf32>
    %17 = arith.mulf %11, %14 : vector<256x128xf32>
    %18 = arith.select %16, %14, %17 : vector<256x128xi1>, vector<256x128xf32>
    %19 = arith.truncf %18 : vector<256x128xf32> to vector<256x128xbf16>
    %c0_6 = arith.constant 0 : index
    %c0_7 = arith.constant 0 : index
    %20 = vector.load %arg6[%c0_6, %c0_7] : memref<256x128xf32, #tpu.memory_space<vmem>>, vector<256x128xf32>
    %c0_8 = arith.constant 0 : index
    %c0_9 = arith.constant 0 : index
    %21 = vector.load %arg3[%c0_8, %c0_9] : memref<256x256xbf16, #tpu.memory_space<vmem>>, vector<256x256xbf16>
    %cst_10 = arith.constant dense<0.000000e+00> : vector<256x128xf32>
    %22 = tpu.matmul %21, %19, %cst_10 {dimension_numbers = #tpu.dot_dimension_numbers<[1], [0], [0], [1], [0, 0, 1, 1], [], []>} : vector<256x256xbf16>, vector<256x128xbf16>, vector<256x128xf32> -> vector<256x128xf32>
    %23 = arith.addf %20, %22 : vector<256x128xf32>
    %c0_11 = arith.constant 0 : index
    %c0_12 = arith.constant 0 : index
    %24 = vector.load %arg6[%c0_11, %c0_12] : memref<256x128xf32, #tpu.memory_space<vmem>>, vector<256x128xf32>
    tpu.vector_store %arg6[%c0_11, %c0_12], %23 {strides = array<i32>} : memref<256x128xf32, #tpu.memory_space<vmem>>, vector<256x128xf32>,
    return
  }
  func.func @transform_0(%arg0: i32, %arg1: i32, %arg2: i32) -> (i32, i32) {
    %c0_i32 = arith.constant 0 : i32
    return %arg0, %arg2 : i32, i32
  }
  func.func @transform_1(%arg0: i32, %arg1: i32, %arg2: i32) -> (i32, i32) {
    %c0_i32 = arith.constant 0 : i32
    return %arg2, %arg1 : i32, i32
  }
  func.func @transform_2(%arg0: i32, %arg1: i32, %arg2: i32) -> (i32, i32) {
    %c0_i32 = arith.constant 0 : i32
    return %arg0, %arg1 : i32, i32
  }
  func.func @transform_3(%arg0: i32, %arg1: i32, %arg2: i32) -> (i32, i32) {
    %c0_i32 = arith.constant 0 : i32
    return %arg0, %arg1 : i32, i32
  }
}

</mosaic_0001>

<llo_original>
// kernel: _dynamics_impl.1
$region0: #{_dynamics_impl.1}
  #allocation0 [shape = 'u32[]', space=smem, size = 0x4, offset = 0x4, fixed_abs, tag = 'smem constant byte address 0x4 - core index']
  #allocation1 [shape = 'u32[72,128]{1,0:T(1,128)}', space=vmem, size = 0x9000, scoped, tag = 'internal scratch']
  %s0 = inlined_call_operand.hbm [shape: bf16[256,256], index: 0, kind: input, shape index: {}]
  %s1 = inlined_call_operand.hbm [shape: f32[256,128], index: 1, kind: input, shape index: {}, may-alias: {1,2}]
  %s2 = inlined_call_operand.hbm [shape: f32[256,128], index: 2, kind: input, shape index: {}, may-alias: {1,2}]
  %s3 = inlined_call_operand.hbm [shape: f32[256,128], index: 3, kind: output, shape index: {}]
  %s4 = sld [smem:[#allocation0]]
  $region38: #{_dynamics_impl.1} parent=0
    _
  %s6 = ssub.s32 1, %s4
  %s7 = scalar_select 0, %s6, %s4
  $region1: #{_dynamics_impl.1} parent=0
    #allocation2 [shape = 'u8[131072]{0}', space=vmem, size = 0x20000, scoped, tag = 'input window, operand 0, single buffered']
    #allocation3 [shape = 's32[1]{0}', space=sflag, size = 0x4, scoped, tag = 'scoped memory for _dynamics_impl.1']
    #allocation4 [shape = 's32[1]{0}', space=sflag, size = 0x4, scoped, tag = 'scoped memory for _dynamics_impl.1']
    #allocation5 [shape = 'u8[131072]{0}', space=vmem, size = 0x20000, scoped, tag = 'input window, operand 1, single buffered']
    #allocation6 [shape = 's32[1]{0}', space=sflag, size = 0x4, scoped, tag = 'scoped memory for _dynamics_impl.1']
    #allocation7 [shape = 'u8[131072]{0}', space=vmem, size = 0x20000, scoped, tag = 'input window, operand 2, single buffered']
    #allocation8 [shape = 'u8[131072]{0}', space=vmem, size = 0x20000, scoped, tag = 'output window, operand 0, single buffered']
    %8 = vsyncpa [#allocation3], 0
    %9 = vsyncpa [#allocation6], 0
    %10 = vsyncpa [#allocation4], 0
    // Predicated region
    $region2: #{_dynamics_impl.1} parent=1 // pred_check
      _
    $region3: #{_dynamics_impl.1} parent=1 // pred_check_branch
      %12 = sbr.rel (0) target = $region5
    $region4: #{_dynamics_impl.1} parent=1 // pred_region
      %14 = vsyncadd [#allocation3], 0
      %s15 = sshll.u32 %s0, 4
      %s16 = int_to_ptr.hbm [resolvable:$true] %s15
      %s17 = sshll.u32 [#allocation2], 4
      %s18 = int_to_ptr.vmem [resolvable:$true] %s17
      %23 = dma.hbm_to_vmem [thread:$0]  %s16, 4096, %s18, [#allocation3], 128, 128, 8
    $region5: #{_dynamics_impl.1} parent=1 // pred_fallthru
      _
    // Predicated region
    $region6: #{_dynamics_impl.1} parent=1 // pred_check
      _
    $region7: #{_dynamics_impl.1} parent=1 // pred_check_branch
      %25 = sbr.rel (0) target = $region9
    $region8: #{_dynamics_impl.1} parent=1 // pred_region
      %27 = vsyncadd [#allocation6], 0
      %s28 = sshll.u32 %s1, 4
      %s29 = int_to_ptr.hbm [resolvable:$true] %s28
      %s30 = sshll.u32 [#allocation5], 4
      %s31 = int_to_ptr.vmem [resolvable:$true] %s30
      %36 = dma.hbm_to_vmem [thread:$0]  %s29, 4096, %s31, [#allocation6], 128, 128, 8
    $region9: #{_dynamics_impl.1} parent=1 // pred_fallthru
      _
    // Predicated region
    $region10: #{_dynamics_impl.1} parent=1 // pred_check
      _
    $region11: #{_dynamics_impl.1} parent=1 // pred_check_branch
      %38 = sbr.rel (0) target = $region13
    $region12: #{_dynamics_impl.1} parent=1 // pred_region
      %40 = vsyncadd [#allocation6], 0
      %s41 = sshll.u32 %s2, 4
      %s42 = int_to_ptr.hbm [resolvable:$true] %s41
      %s43 = sshll.u32 [#allocation7], 4
      %s44 = int_to_ptr.vmem [resolvable:$true] %s43
      %49 = dma.hbm_to_vmem [thread:$0]  %s42, 4096, %s44, [#allocation6], 128, 128, 8
    $region13: #{_dynamics_impl.1} parent=1 // pred_fallthru
      _
    // Predicated region
    $region14: #{_dynamics_impl.1} parent=1 // pred_check
      _
    $region15: #{_dynamics_impl.1} parent=1 // pred_check_branch
      %51 = sbr.rel (0) target = $region17
    $region16: #{_dynamics_impl.1} parent=1 // pred_region
      %53 = dma.done [#allocation3], 4096
    $region17: #{_dynamics_impl.1} parent=1 // pred_fallthru
      _
    // Predicated region
    $region18: #{_dynamics_impl.1} parent=1 // pred_check
      _
    $region19: #{_dynamics_impl.1} parent=1 // pred_check_branch
      %55 = sbr.rel (0) target = $region21
    $region20: #{_dynamics_impl.1} parent=1 // pred_region
      %57 = dma.done [#allocation6], 4096
    $region21: #{_dynamics_impl.1} parent=1 // pred_fallthru
      _
    // Predicated region
    $region22: #{_dynamics_impl.1} parent=1 // pred_check
      _
    $region23: #{_dynamics_impl.1} parent=1 // pred_check_branch
      %59 = sbr.rel (0) target = $region25
    $region24: #{_dynamics_impl.1} parent=1 // pred_region
      %61 = dma.done [#allocation6], 4096
    $region25: #{_dynamics_impl.1} parent=1 // pred_fallthru
      _
    %p62 = scmp.eq.s32.totalorder 0, 0
    // Predicated region
    $region26: #{_dynamics_impl.1} parent=1 // pred_check
      %p63 = pneg %p62
    $region27: #{_dynamics_impl.1} parent=1 // pred_check_branch
      %65 = sbr.rel (%p63) target = $region29
    $region28: #{_dynamics_impl.1} parent=1 // pred_region
      %v66 = vld [vmem:[#allocation7] sm:$0xff]
      %v67 = vld [vmem:[#allocation7 + $0x8] sm:$0xff]
      %v68 = vld [vmem:[#allocation7 + $0x10] sm:$0xff]
      %v69 = vld [vmem:[#allocation7 + $0x18] sm:$0xff]
      %v70 = vld [vmem:[#allocation7 + $0x20] sm:$0xff]
      %v71 = vld [vmem:[#allocation7 + $0x28] sm:$0xff]
      %v72 = vld [vmem:[#allocation7 + $0x30] sm:$0xff]
      %v73 = vld [vmem:[#allocation7 + $0x38] sm:$0xff]
      %v74 = vld [vmem:[#allocation7 + $0x40] sm:$0xff]
      %v75 = vld [vmem:[#allocation7 + $0x48] sm:$0xff]
      %v76 = vld [vmem:[#allocation7 + $0x50] sm:$0xff]
      %v77 = vld [vmem:[#allocation7 + $0x58] sm:$0xff]
      %v78 = vld [vmem:[#allocation7 + $0x60] sm:$0xff]
      %v79 = vld [vmem:[#allocation7 + $0x68] sm:$0xff]
      %v80 = vld [vmem:[#allocation7 + $0x70] sm:$0xff]
      %v81 = vld [vmem:[#allocation7 + $0x78] sm:$0xff]
      %v82 = vld [vmem:[#allocation7 + $0x80] sm:$0xff]
      %v83 = vld [vmem:[#allocation7 + $0x88] sm:$0xff]
      %v84 = vld [vmem:[#allocation7 + $0x90] sm:$0xff]
      %v85 = vld [vmem:[#allocation7 + $0x98] sm:$0xff]
      %v86 = vld [vmem:[#allocation7 + $0xa0] sm:$0xff]
      %v87 = vld [vmem:[#allocation7 + $0xa8] sm:$0xff]
      %v88 = vld [vmem:[#allocation7 + $0xb0] sm:$0xff]
      %v89 = vld [vmem:[#allocation7 + $0xb8] sm:$0xff]
      %v90 = vld [vmem:[#allocation7 + $0xc0] sm:$0xff]
      %v91 = vld [vmem:[#allocation7 + $0xc8] sm:$0xff]
      %v92 = vld [vmem:[#allocation7 + $0xd0] sm:$0xff]
      %v93 = vld [vmem:[#allocation7 + $0xd8] sm:$0xff]
      %v94 = vld [vmem:[#allocation7 + $0xe0] sm:$0xff]
      %v95 = vld [vmem:[#allocation7 + $0xe8] sm:$0xff]
      %v96 = vld [vmem:[#allocation7 + $0xf0] sm:$0xff]
      %v97 = vld [vmem:[#allocation7 + $0xf8] sm:$0xff]
      %v98 = vsub.f32 0.0, %v66
      %v99 = vsub.f32 0.0, %v67
      %v100 = vsub.f32 0.0, %v68
      %v101 = vsub.f32 0.0, %v69
      %v102 = vsub.f32 0.0, %v70
      %v103 = vsub.f32 0.0, %v71
      %v104 = vsub.f32 0.0, %v72
      %v105 = vsub.f32 0.0, %v73
      %v106 = vsub.f32 0.0, %v74
      %v107 = vsub.f32 0.0, %v75
      %v108 = vsub.f32 0.0, %v76
      %v109 = vsub.f32 0.0, %v77
      %v110 = vsub.f32 0.0, %v78
      %v111 = vsub.f32 0.0, %v79
      %v112 = vsub.f32 0.0, %v80
      %v113 = vsub.f32 0.0, %v81
      %v114 = vsub.f32 0.0, %v82
      %v115 = vsub.f32 0.0, %v83
      %v116 = vsub.f32 0.0, %v84
      %v117 = vsub.f32 0.0, %v85
      %v118 = vsub.f32 0.0, %v86
      %v119 = vsub.f32 0.0, %v87
      %v120 = vsub.f32 0.0, %v88
      %v121 = vsub.f32 0.0, %v89
      %v122 = vsub.f32 0.0, %v90
      %v123 = vsub.f32 0.0, %v91
      %v124 = vsub.f32 0.0, %v92
      %v125 = vsub.f32 0.0, %v93
      %v126 = vsub.f32 0.0, %v94
      %v127 = vsub.f32 0.0, %v95
      %v128 = vsub.f32 0.0, %v96
      %v129 = vsub.f32 0.0, %v97
      %130 = vst [vmem:[#allocation8] sm:$0xff] %v98
      %131 = vst [vmem:[#allocation8 + $0x8] sm:$0xff] %v99
      %132 = vst [vmem:[#allocation8 + $0x10] sm:$0xff] %v100
      %133 = vst [vmem:[#allocation8 + $0x18] sm:$0xff] %v101
      %134 = vst [vmem:[#allocation8 + $0x20] sm:$0xff] %v102
      %135 = vst [vmem:[#allocation8 + $0x28] sm:$0xff] %v103
      %136 = vst [vmem:[#allocation8 + $0x30] sm:$0xff] %v104
      %137 = vst [vmem:[#allocation8 + $0x38] sm:$0xff] %v105
      %138 = vst [vmem:[#allocation8 + $0x40] sm:$0xff] %v106
      %139 = vst [vmem:[#allocation8 + $0x48] sm:$0xff] %v107
      %140 = vst [vmem:[#allocation8 + $0x50] sm:$0xff] %v108
      %141 = vst [vmem:[#allocation8 + $0x58] sm:$0xff] %v109
      %142 = vst [vmem:[#allocation8 + $0x60] sm:$0xff] %v110
      %143 = vst [vmem:[#allocation8 + $0x68] sm:$0xff] %v111
      %144 = vst [vmem:[#allocation8 + $0x70] sm:$0xff] %v112
      %145 = vst [vmem:[#allocation8 + $0x78] sm:$0xff] %v113
      %146 = vst [vmem:[#allocation8 + $0x80] sm:$0xff] %v114
      %147 = vst [vmem:[#allocation8 + $0x88] sm:$0xff] %v115
      %148 = vst [vmem:[#allocation8 + $0x90] sm:$0xff] %v116
      %149 = vst [vmem:[#allocation8 + $0x98] sm:$0xff] %v117
      %150 = vst [vmem:[#allocation8 + $0xa0] sm:$0xff] %v118
      %151 = vst [vmem:[#allocation8 + $0xa8] sm:$0xff] %v119
      %152 = vst [vmem:[#allocation8 + $0xb0] sm:$0xff] %v120
      %153 = vst [vmem:[#allocation8 + $0xb8] sm:$0xff] %v121
      %154 = vst [vmem:[#allocation8 + $0xc0] sm:$0xff] %v122
      %155 = vst [vmem:[#allocation8 + $0xc8] sm:$0xff] %v123
      %156 = vst [vmem:[#allocation8 + $0xd0] sm:$0xff] %v124
      %157 = vst [vmem:[#allocation8 + $0xd8] sm:$0xff] %v125
      %158 = vst [vmem:[#allocation8 + $0xe0] sm:$0xff] %v126
      %159 = vst [vmem:[#allocation8 + $0xe8] sm:$0xff] %v127
      %160 = vst [vmem:[#allocation8 + $0xf0] sm:$0xff] %v128
      %161 = vst [vmem:[#allocation8 + $0xf8] sm:$0xff] %v129
    $region29: #{_dynamics_impl.1} parent=1 // pred_fallthru
      _
    %v162 = vld [vmem:[#allocation5] sm:$0xff]
    %v163 = vld [vmem:[#allocation5 + $0x8] sm:$0xff]
    %v164 = vld [vmem:[#allocation5 + $0x10] sm:$0xff]
    %v165 = vld [vmem:[#allocation5 + $0x18] sm:$0xff]
    %v166 = vld [vmem:[#allocation5 + $0x20] sm:$0xff]
    %v167 = vld [vmem:[#allocation5 + $0x28] sm:$0xff]
    %v168 = vld [vmem:[#allocation5 + $0x30] sm:$0xff]
    %v169 = vld [vmem:[#allocation5 + $0x38] sm:$0xff]
    %v170 = vld [vmem:[#allocation5 + $0x40] sm:$0xff]
    %v171 = vld [vmem:[#allocation5 + $0x48] sm:$0xff]
    %v172 = vld [vmem:[#allocation5 + $0x50] sm:$0xff]
    %v173 = vld [vmem:[#allocation5 + $0x58] sm:$0xff]
    %v174 = vld [vmem:[#allocation5 + $0x60] sm:$0xff]
    %v175 = vld [vmem:[#allocation5 + $0x68] sm:$0xff]
    %v176 = vld [vmem:[#allocation5 + $0x70] sm:$0xff]
    %v177 = vld [vmem:[#allocation5 + $0x78] sm:$0xff]
    %v178 = vld [vmem:[#allocation5 + $0x80] sm:$0xff]
    %v179 = vld [vmem:[#allocation5 + $0x88] sm:$0xff]
    %v180 = vld [vmem:[#allocation5 + $0x90] sm:$0xff]
    %v181 = vld [vmem:[#allocation5 + $0x98] sm:$0xff]
    %v182 = vld [vmem:[#allocation5 + $0xa0] sm:$0xff]
    %v183 = vld [vmem:[#allocation5 + $0xa8] sm:$0xff]
    %v184 = vld [vmem:[#allocation5 + $0xb0] sm:$0xff]
    %v185 = vld [vmem:[#allocation5 + $0xb8] sm:$0xff]
    %v186 = vld [vmem:[#allocation5 + $0xc0] sm:$0xff]
    %v187 = vld [vmem:[#allocation5 + $0xc8] sm:$0xff]
    %v188 = vld [vmem:[#allocation5 + $0xd0] sm:$0xff]
    %v189 = vld [vmem:[#allocation5 + $0xd8] sm:$0xff]
    %v190 = vld [vmem:[#allocation5 + $0xe0] sm:$0xff]
    %v191 = vld [vmem:[#allocation5 + $0xe8] sm:$0xff]
    %v192 = vld [vmem:[#allocation5 + $0xf0] sm:$0xff]
    %v193 = vld [vmem:[#allocation5 + $0xf8] sm:$0xff]
    %v194 = vmul.f32 %v162, 2.0
    %v195 = vmul.f32 %v163, 2.0
    %v196 = vmul.f32 %v164, 2.0
    %v197 = vmul.f32 %v165, 2.0
    %v198 = vmul.f32 %v166, 2.0
    %v199 = vmul.f32 %v167, 2.0
    %v200 = vmul.f32 %v168, 2.0
    %v201 = vmul.f32 %v169, 2.0
    %v202 = vmul.f32 %v170, 2.0
    %v203 = vmul.f32 %v171, 2.0
    %v204 = vmul.f32 %v172, 2.0
    %v205 = vmul.f32 %v173, 2.0
    %v206 = vmul.f32 %v174, 2.0
    %v207 = vmul.f32 %v175, 2.0
    %v208 = vmul.f32 %v176, 2.0
    %v209 = vmul.f32 %v177, 2.0
    %v210 = vmul.f32 %v178, 2.0
    %v211 = vmul.f32 %v179, 2.0
    %v212 = vmul.f32 %v180, 2.0
    %v213 = vmul.f32 %v181, 2.0
    %v214 = vmul.f32 %v182, 2.0
    %v215 = vmul.f32 %v183, 2.0
    %v216 = vmul.f32 %v184, 2.0
    %v217 = vmul.f32 %v185, 2.0
    %v218 = vmul.f32 %v186, 2.0
    %v219 = vmul.f32 %v187, 2.0
    %v220 = vmul.f32 %v188, 2.0
    %v221 = vmul.f32 %v189, 2.0
    %v222 = vmul.f32 %v190, 2.0
    %v223 = vmul.f32 %v191, 2.0
    %v224 = vmul.f32 %v192, 2.0
    %v225 = vmul.f32 %v193, 2.0
    %v226 = vsub.f32 %v194, 3.5
    %v227 = vsub.f32 %v195, 3.5
    %v228 = vsub.f32 %v196, 3.5
    %v229 = vsub.f32 %v197, 3.5
    %v230 = vsub.f32 %v198, 3.5
    %v231 = vsub.f32 %v199, 3.5
    %v232 = vsub.f32 %v200, 3.5
    %v233 = vsub.f32 %v201, 3.5
    %v234 = vsub.f32 %v202, 3.5
    %v235 = vsub.f32 %v203, 3.5
    %v236 = vsub.f32 %v204, 3.5
    %v237 = vsub.f32 %v205, 3.5
    %v238 = vsub.f32 %v206, 3.5
    %v239 = vsub.f32 %v207, 3.5
    %v240 = vsub.f32 %v208, 3.5
    %v241 = vsub.f32 %v209, 3.5
    %v242 = vsub.f32 %v210, 3.5
    %v243 = vsub.f32 %v211, 3.5
    %v244 = vsub.f32 %v212, 3.5
    %v245 = vsub.f32 %v213, 3.5
    %v246 = vsub.f32 %v214, 3.5
    %v247 = vsub.f32 %v215, 3.5
    %v248 = vsub.f32 %v216, 3.5
    %v249 = vsub.f32 %v217, 3.5
    %v250 = vsub.f32 %v218, 3.5
    %v251 = vsub.f32 %v219, 3.5
    %v252 = vsub.f32 %v220, 3.5
    %v253 = vsub.f32 %v221, 3.5
    %v254 = vsub.f32 %v222, 3.5
    %v255 = vsub.f32 %v223, 3.5
    %v256 = vsub.f32 %v224, 3.5
    %v257 = vsub.f32 %v225, 3.5
    %v258 = vand.u32 2147483647, %v226
    %v259 = vand.u32 2147483647, %v227
    %v260 = vand.u32 2147483647, %v228
    %v261 = vand.u32 2147483647, %v229
    %v262 = vand.u32 2147483647, %v230
    %v263 = vand.u32 2147483647, %v231
    %v264 = vand.u32 2147483647, %v232
    %v265 = vand.u32 2147483647, %v233
    %v266 = vand.u32 2147483647, %v234
    %v267 = vand.u32 2147483647, %v235
    %v268 = vand.u32 2147483647, %v236
    %v269 = vand.u32 2147483647, %v237
    %v270 = vand.u32 2147483647, %v238
    %v271 = vand.u32 2147483647, %v239
    %v272 = vand.u32 2147483647, %v240
    %v273 = vand.u32 2147483647, %v241
    %v274 = vand.u32 2147483647, %v242
    %v275 = vand.u32 2147483647, %v243
    %v276 = vand.u32 2147483647, %v244
    %v277 = vand.u32 2147483647, %v245
    %v278 = vand.u32 2147483647, %v246
    %v279 = vand.u32 2147483647, %v247
    %v280 = vand.u32 2147483647, %v248
    %v281 = vand.u32 2147483647, %v249
    %v282 = vand.u32 2147483647, %v250
    %v283 = vand.u32 2147483647, %v251
    %v284 = vand.u32 2147483647, %v252
    %v285 = vand.u32 2147483647, %v253
    %v286 = vand.u32 2147483647, %v254
    %v287 = vand.u32 2147483647, %v255
    %v288 = vand.u32 2147483647, %v256
    %v289 = vand.u32 2147483647, %v257
    %v290 = vsub.f32 0.0, %v258
    %v291 = vsub.f32 0.0, %v259
    %v292 = vsub.f32 0.0, %v260
    %v293 = vsub.f32 0.0, %v261
    %v294 = vsub.f32 0.0, %v262
    %v295 = vsub.f32 0.0, %v263
    %v296 = vsub.f32 0.0, %v264
    %v297 = vsub.f32 0.0, %v265
    %v298 = vsub.f32 0.0, %v266
    %v299 = vsub.f32 0.0, %v267
    %v300 = vsub.f32 0.0, %v268
    %v301 = vsub.f32 0.0, %v269
    %v302 = vsub.f32 0.0, %v270
    %v303 = vsub.f32 0.0, %v271
    %v304 = vsub.f32 0.0, %v272
    %v305 = vsub.f32 0.0, %v273
    %v306 = vsub.f32 0.0, %v274
    %v307 = vsub.f32 0.0, %v275
    %v308 = vsub.f32 0.0, %v276
    %v309 = vsub.f32 0.0, %v277
    %v310 = vsub.f32 0.0, %v278
    %v311 = vsub.f32 0.0, %v279
    %v312 = vsub.f32 0.0, %v280
    %v313 = vsub.f32 0.0, %v281
    %v314 = vsub.f32 0.0, %v282
    %v315 = vsub.f32 0.0, %v283
    %v316 = vsub.f32 0.0, %v284
    %v317 = vsub.f32 0.0, %v285
    %v318 = vsub.f32 0.0, %v286
    %v319 = vsub.f32 0.0, %v287
    %v320 = vsub.f32 0.0, %v288
    %v321 = vsub.f32 0.0, %v289
    %v322 = vmul.f32 %v290, 1.442695
    %v323 = vpow.pop %v322
    %v324 = vmul.f32 %v291, 1.442695
    %v325 = vpow.pop %v324
    %v326 = vmul.f32 %v292, 1.442695
    %v327 = vpow.pop %v326
    %v328 = vmul.f32 %v293, 1.442695
    %v329 = vpow.pop %v328
    %v330 = vmul.f32 %v294, 1.442695
    %v331 = vpow.pop %v330
    %v332 = vmul.f32 %v295, 1.442695
    %v333 = vpow.pop %v332
    %v334 = vmul.f32 %v296, 1.442695
    %v335 = vpow.pop %v334
    %v336 = vmul.f32 %v297, 1.442695
    %v337 = vpow.pop %v336
    %v338 = vmul.f32 %v298, 1.442695
    %v339 = vpow.pop %v338
    %v340 = vmul.f32 %v299, 1.442695
    %v341 = vpow.pop %v340
    %v342 = vmul.f32 %v300, 1.442695
    %v343 = vpow.pop %v342
    %v344 = vmul.f32 %v301, 1.442695
    %v345 = vpow.pop %v344
    %v346 = vmul.f32 %v302, 1.442695
    %v347 = vpow.pop %v346
    %v348 = vmul.f32 %v303, 1.442695
    %v349 = vpow.pop %v348
    %v350 = vmul.f32 %v304, 1.442695
    %v351 = vpow.pop %v350
    %v352 = vmul.f32 %v305, 1.442695
    %v353 = vpow.pop %v352
    %v354 = vmul.f32 %v306, 1.442695
    %v355 = vpow.pop %v354
    %v356 = vmul.f32 %v307, 1.442695
    %v357 = vpow.pop %v356
    %v358 = vmul.f32 %v308, 1.442695
    %v359 = vpow.pop %v358
    %v360 = vmul.f32 %v309, 1.442695
    %v361 = vpow.pop %v360
    %v362 = vmul.f32 %v310, 1.442695
    %v363 = vpow.pop %v362
    %v364 = vmul.f32 %v311, 1.442695
    %v365 = vpow.pop %v364
    %v366 = vmul.f32 %v312, 1.442695
    %v367 = vpow.pop %v366
    %v368 = vmul.f32 %v313, 1.442695
    %v369 = vpow.pop %v368
    %v370 = vmul.f32 %v314, 1.442695
    %v371 = vpow.pop %v370
    %v372 = vmul.f32 %v315, 1.442695
    %v373 = vpow.pop %v372
    %v374 = vmul.f32 %v316, 1.442695
    %v375 = vpow.pop %v374
    %v376 = vmul.f32 %v317, 1.442695
    %v377 = vpow.pop %v376
    %v378 = vmul.f32 %v318, 1.442695
    %v379 = vpow.pop %v378
    %v380 = vmul.f32 %v319, 1.442695
    %v381 = vpow.pop %v380
    %v382 = vmul.f32 %v320, 1.442695
    %v383 = vpow.pop %v382
    %v384 = vmul.f32 %v321, 1.442695
    %v385 = vpow.pop %v384
    %v386 = vadd.f32 %v323, 1.0
    %v387 = vadd.f32 %v325, 1.0
    %v388 = vadd.f32 %v327, 1.0
    %v389 = vadd.f32 %v329, 1.0
    %v390 = vadd.f32 %v331, 1.0
    %v391 = vadd.f32 %v333, 1.0
    %v392 = vadd.f32 %v335, 1.0
    %v393 = vadd.f32 %v337, 1.0
    %v394 = vadd.f32 %v339, 1.0
    %v395 = vadd.f32 %v341, 1.0
    %v396 = vadd.f32 %v343, 1.0
    %v397 = vadd.f32 %v345, 1.0
    %v398 = vadd.f32 %v347, 1.0
    %v399 = vadd.f32 %v349, 1.0
    %v400 = vadd.f32 %v351, 1.0
    %v401 = vadd.f32 %v353, 1.0
    %v402 = vadd.f32 %v355, 1.0
    %v403 = vadd.f32 %v357, 1.0
    %v404 = vadd.f32 %v359, 1.0
    %v405 = vadd.f32 %v361, 1.0
    %v406 = vadd.f32 %v363, 1.0
    %v407 = vadd.f32 %v365, 1.0
    %v408 = vadd.f32 %v367, 1.0
    %v409 = vadd.f32 %v369, 1.0
    %v410 = vadd.f32 %v371, 1.0
    %v411 = vadd.f32 %v373, 1.0
    %v412 = vadd.f32 %v375, 1.0
    %v413 = vadd.f32 %v377, 1.0
    %v414 = vadd.f32 %v379, 1.0
    %v415 = vadd.f32 %v381, 1.0
    %v416 = vadd.f32 %v383, 1.0
    %v417 = vadd.f32 %v385, 1.0
    %v418 = vrcp.pop %v386
    %v419 = vrcp.pop %v387
    %v420 = vrcp.pop %v388
    %v421 = vrcp.pop %v389
    %v422 = vrcp.pop %v390
    %v423 = vrcp.pop %v391
    %v424 = vrcp.pop %v392
    %v425 = vrcp.pop %v393
    %v426 = vrcp.pop %v394
    %v427 = vrcp.pop %v395
    %v428 = vrcp.pop %v396
    %v429 = vrcp.pop %v397
    %v430 = vrcp.pop %v398
    %v431 = vrcp.pop %v399
    %v432 = vrcp.pop %v400
    %v433 = vrcp.pop %v401
    %v434 = vrcp.pop %v402
    %v435 = vrcp.pop %v403
    %v436 = vrcp.pop %v404
    %v437 = vrcp.pop %v405
    %v438 = vrcp.pop %v406
    %v439 = vrcp.pop %v407
    %v440 = vrcp.pop %v408
    %v441 = vrcp.pop %v409
    %v442 = vrcp.pop %v410
    %v443 = vrcp.pop %v411
    %v444 = vrcp.pop %v412
    %v445 = vrcp.pop %v413
    %v446 = vrcp.pop %v414
    %v447 = vrcp.pop %v415
    %v448 = vrcp.pop %v416
    %v449 = vrcp.pop %v417
    %vm450 = vcmp.ge.f32.partialorder %v226, 0.0
    %vm451 = vcmp.ge.f32.partialorder %v227, 0.0
    %vm452 = vcmp.ge.f32.partialorder %v228, 0.0
    %vm453 = vcmp.ge.f32.partialorder %v229, 0.0
    %vm454 = vcmp.ge.f32.partialorder %v230, 0.0
    %vm455 = vcmp.ge.f32.partialorder %v231, 0.0
    %vm456 = vcmp.ge.f32.partialorder %v232, 0.0
    %vm457 = vcmp.ge.f32.partialorder %v233, 0.0
    %vm458 = vcmp.ge.f32.partialorder %v234, 0.0
    %vm459 = vcmp.ge.f32.partialorder %v235, 0.0
    %vm460 = vcmp.ge.f32.partialorder %v236, 0.0
    %vm461 = vcmp.ge.f32.partialorder %v237, 0.0
    %vm462 = vcmp.ge.f32.partialorder %v238, 0.0
    %vm463 = vcmp.ge.f32.partialorder %v239, 0.0
    %vm464 = vcmp.ge.f32.partialorder %v240, 0.0
    %vm465 = vcmp.ge.f32.partialorder %v241, 0.0
    %vm466 = vcmp.ge.f32.partialorder %v242, 0.0
    %vm467 = vcmp.ge.f32.partialorder %v243, 0.0
    %vm468 = vcmp.ge.f32.partialorder %v244, 0.0
    %vm469 = vcmp.ge.f32.partialorder %v245, 0.0
    %vm470 = vcmp.ge.f32.partialorder %v246, 0.0
    %vm471 = vcmp.ge.f32.partialorder %v247, 0.0
    %vm472 = vcmp.ge.f32.partialorder %v248, 0.0
    %vm473 = vcmp.ge.f32.partialorder %v249, 0.0
    %vm474 = vcmp.ge.f32.partialorder %v250, 0.0
    %vm475 = vcmp.ge.f32.partialorder %v251, 0.0
    %vm476 = vcmp.ge.f32.partialorder %v252, 0.0
    %vm477 = vcmp.ge.f32.partialorder %v253, 0.0
    %vm478 = vcmp.ge.f32.partialorder %v254, 0.0
    %vm479 = vcmp.ge.f32.partialorder %v255, 0.0
    %vm480 = vcmp.ge.f32.partialorder %v256, 0.0
    %vm481 = vcmp.ge.f32.partialorder %v257, 0.0
    %v482 = vmul.f32 %v323, %v418
    %v483 = vmul.f32 %v325, %v419
    %v484 = vmul.f32 %v327, %v420
    %v485 = vmul.f32 %v329, %v421
    %v486 = vmul.f32 %v331, %v422
    %v487 = vmul.f32 %v333, %v423
    %v488 = vmul.f32 %v335, %v424
    %v489 = vmul.f32 %v337, %v425
    %v490 = vmul.f32 %v339, %v426
    %v491 = vmul.f32 %v341, %v427
    %v492 = vmul.f32 %v343, %v428
    %v493 = vmul.f32 %v345, %v429
    %v494 = vmul.f32 %v347, %v430
    %v495 = vmul.f32 %v349, %v431
    %v496 = vmul.f32 %v351, %v432
    %v497 = vmul.f32 %v353, %v433
    %v498 = vmul.f32 %v355, %v434
    %v499 = vmul.f32 %v357, %v435
    %v500 = vmul.f32 %v359, %v436
    %v501 = vmul.f32 %v361, %v437
    %v502 = vmul.f32 %v363, %v438
    %v503 = vmul.f32 %v365, %v439
    %v504 = vmul.f32 %v367, %v440
    %v505 = vmul.f32 %v369, %v441
    %v506 = vmul.f32 %v371, %v442
    %v507 = vmul.f32 %v373, %v443
    %v508 = vmul.f32 %v375, %v444
    %v509 = vmul.f32 %v377, %v445
    %v510 = vmul.f32 %v379, %v446
    %v511 = vmul.f32 %v381, %v447
    %v512 = vmul.f32 %v383, %v448
    %v513 = vmul.f32 %v385, %v449
    %v514 = vsel %vm450, %v418, %v482
    %v515 = vsel %vm451, %v419, %v483
    %v516 = vsel %vm452, %v420, %v484
    %v517 = vsel %vm453, %v421, %v485
    %v518 = vsel %vm454, %v422, %v486
    %v519 = vsel %vm455, %v423, %v487
    %v520 = vsel %vm456, %v424, %v488
    %v521 = vsel %vm457, %v425, %v489
    %v522 = vsel %vm458, %v426, %v490
    %v523 = vsel %vm459, %v427, %v491
    %v524 = vsel %vm460, %v428, %v492
    %v525 = vsel %vm461, %v429, %v493
    %v526 = vsel %vm462, %v430, %v494
    %v527 = vsel %vm463, %v431, %v495
    %v528 = vsel %vm464, %v432, %v496
    %v529 = vsel %vm465, %v433, %v497
    %v530 = vsel %vm466, %v434, %v498
    %v531 = vsel %vm467, %v435, %v499
    %v532 = vsel %vm468, %v436, %v500
    %v533 = vsel %vm469, %v437, %v501
    %v534 = vsel %vm470, %v438, %v502
    %v535 = vsel %vm471, %v439, %v503
    %v536 = vsel %vm472, %v440, %v504
    %v537 = vsel %vm473, %v441, %v505
    %v538 = vsel %vm474, %v442, %v506
    %v539 = vsel %vm475, %v443, %v507
    %v540 = vsel %vm476, %v444, %v508
    %v541 = vsel %vm477, %v445, %v509
    %v542 = vsel %vm478, %v446, %v510
    %v543 = vsel %vm479, %v447, %v511
    %v544 = vsel %vm480, %v448, %v512
    %v545 = vsel %vm481, %v449, %v513
    %v546 = vpack.c.bf16 %v515, %v514
    %v547 = vpack.c.bf16 %v517, %v516
    %v548 = vpack.c.bf16 %v519, %v518
    %v549 = vpack.c.bf16 %v521, %v520
    %v550 = vpack.c.bf16 %v523, %v522
    %v551 = vpack.c.bf16 %v525, %v524
    %v552 = vpack.c.bf16 %v527, %v526
    %v553 = vpack.c.bf16 %v529, %v528
    %v554 = vpack.c.bf16 %v531, %v530
    %v555 = vpack.c.bf16 %v533, %v532
    %v556 = vpack.c.bf16 %v535, %v534
    %v557 = vpack.c.bf16 %v537, %v536
    %v558 = vpack.c.bf16 %v539, %v538
    %v559 = vpack.c.bf16 %v541, %v540
    %v560 = vpack.c.bf16 %v543, %v542
    %v561 = vpack.c.bf16 %v545, %v544
    %v562 = vld [vmem:[#allocation8] sm:$0xff]
    %v563 = vld [vmem:[#allocation8 + $0x8] sm:$0xff]
    %v564 = vld [vmem:[#allocation8 + $0x10] sm:$0xff]
    %v565 = vld [vmem:[#allocation8 + $0x18] sm:$0xff]
    %v566 = vld [vmem:[#allocation8 + $0x20] sm:$0xff]
    %v567 = vld [vmem:[#allocation8 + $0x28] sm:$0xff]
    %v568 = vld [vmem:[#allocation8 + $0x30] sm:$0xff]
    %v569 = vld [vmem:[#allocation8 + $0x38] sm:$0xff]
    %v570 = vld [vmem:[#allocation8 + $0x40] sm:$0xff]
    %v571 = vld [vmem:[#allocation8 + $0x48] sm:$0xff]
    %v572 = vld [vmem:[#allocation8 + $0x50] sm:$0xff]
    %v573 = vld [vmem:[#allocation8 + $0x58] sm:$0xff]
    %v574 = vld [vmem:[#allocation8 + $0x60] sm:$0xff]
    %v575 = vld [vmem:[#allocation8 + $0x68] sm:$0xff]
    %v576 = vld [vmem:[#allocation8 + $0x70] sm:$0xff]
    %v577 = vld [vmem:[#allocation8 + $0x78] sm:$0xff]
    %v578 = vld [vmem:[#allocation8 + $0x80] sm:$0xff]
    %v579 = vld [vmem:[#allocation8 + $0x88] sm:$0xff]
    %v580 = vld [vmem:[#allocation8 + $0x90] sm:$0xff]
    %v581 = vld [vmem:[#allocation8 + $0x98] sm:$0xff]
    %v582 = vld [vmem:[#allocation8 + $0xa0] sm:$0xff]
    %v583 = vld [vmem:[#allocation8 + $0xa8] sm:$0xff]
    %v584 = vld [vmem:[#allocation8 + $0xb0] sm:$0xff]
    %v585 = vld [vmem:[#allocation8 + $0xb8] sm:$0xff]
    %v586 = vld [vmem:[#allocation8 + $0xc0] sm:$0xff]
    %v587 = vld [vmem:[#allocation8 + $0xc8] sm:$0xff]
    %v588 = vld [vmem:[#allocation8 + $0xd0] sm:$0xff]
    %v589 = vld [vmem:[#allocation8 + $0xd8] sm:$0xff]
    %v590 = vld [vmem:[#allocation8 + $0xe0] sm:$0xff]
    %v591 = vld [vmem:[#allocation8 + $0xe8] sm:$0xff]
    %v592 = vld [vmem:[#allocation8 + $0xf0] sm:$0xff]
    %v593 = vld [vmem:[#allocation8 + $0xf8] sm:$0xff]
    %v594 = vld [vmem:[#allocation2] sm:$0xff]
    %v595 = vld [vmem:[#allocation2 + $0x8] sm:$0xff]
    %v596 = vld [vmem:[#allocation2 + $0x10] sm:$0xff]
    %v597 = vld [vmem:[#allocation2 + $0x18] sm:$0xff]
    %v598 = vld [vmem:[#allocation2 + $0x20] sm:$0xff]
    %v599 = vld [vmem:[#allocation2 + $0x28] sm:$0xff]
    %v600 = vld [vmem:[#allocation2 + $0x30] sm:$0xff]
    %v601 = vld [vmem:[#allocation2 + $0x38] sm:$0xff]
    %v602 = vld [vmem:[#allocation2 + $0x40] sm:$0xff]
    %v603 = vld [vmem:[#allocation2 + $0x48] sm:$0xff]
    %v604 = vld [vmem:[#allocation2 + $0x50] sm:$0xff]
    %v605 = vld [vmem:[#allocation2 + $0x58] sm:$0xff]
    %v606 = vld [vmem:[#allocation2 + $0x60] sm:$0xff]
    %v607 = vld [vmem:[#allocation2 + $0x68] sm:$0xff]
    %v608 = vld [vmem:[#allocation2 + $0x70] sm:$0xff]
    %v609 = vld [vmem:[#allocation2 + $0x78] sm:$0xff]
    %v610 = vld [vmem:[#allocation2 + $0x80] sm:$0xff]
    %v611 = vld [vmem:[#allocation2 + $0x88] sm:$0xff]
    %v612 = vld [vmem:[#allocation2 + $0x90] sm:$0xff]
    %v613 = vld [vmem:[#allocation2 + $0x98] sm:$0xff]
    %v614 = vld [vmem:[#allocation2 + $0xa0] sm:$0xff]
    %v615 = vld [vmem:[#allocation2 + $0xa8] sm:$0xff]
    %v616 = vld [vmem:[#allocation2 + $0xb0] sm:$0xff]
    %v617 = vld [vmem:[#allocation2 + $0xb8] sm:$0xff]
    %v618 = vld [vmem:[#allocation2 + $0xc0] sm:$0xff]
    %v619 = vld [vmem:[#allocation2 + $0xc8] sm:$0xff]
    %v620 = vld [vmem:[#allocation2 + $0xd0] sm:$0xff]
    %v621 = vld [vmem:[#allocation2 + $0xd8] sm:$0xff]
    %v622 = vld [vmem:[#allocation2 + $0xe0] sm:$0xff]
    %v623 = vld [vmem:[#allocation2 + $0xe8] sm:$0xff]
    %v624 = vld [vmem:[#allocation2 + $0xf0] sm:$0xff]
    %v625 = vld [vmem:[#allocation2 + $0xf8] sm:$0xff]
    %v658 = vunpack.c.l.b16 %v594
    %v659 = vunpack.c.h.b16 %v594
    %v660 = vunpack.c.l.b16 %v595
    %v661 = vunpack.c.h.b16 %v595
    %v662 = vunpack.c.l.b16 %v596
    %v663 = vunpack.c.h.b16 %v596
    %v664 = vunpack.c.l.b16 %v597
    %v665 = vunpack.c.h.b16 %v597
    %v666 = vunpack.c.l.b16 %v598
    %v667 = vunpack.c.h.b16 %v598
    %v668 = vunpack.c.l.b16 %v599
    %v669 = vunpack.c.h.b16 %v599
    %v670 = vunpack.c.l.b16 %v600
    %v671 = vunpack.c.h.b16 %v600
    %v672 = vunpack.c.l.b16 %v601
    %v673 = vunpack.c.h.b16 %v601
    %v674 = vunpack.c.l.b16 %v602
    %v675 = vunpack.c.h.b16 %v602
    %v676 = vunpack.c.l.b16 %v603
    %v677 = vunpack.c.h.b16 %v603
    %v678 = vunpack.c.l.b16 %v604
    %v679 = vunpack.c.h.b16 %v604
    %v680 = vunpack.c.l.b16 %v605
    %v681 = vunpack.c.h.b16 %v605
    %v682 = vunpack.c.l.b16 %v606
    %v683 = vunpack.c.h.b16 %v606
    %v684 = vunpack.c.l.b16 %v607
    %v685 = vunpack.c.h.b16 %v607
    %v686 = vunpack.c.l.b16 %v608
    %v687 = vunpack.c.h.b16 %v608
    %v688 = vunpack.c.l.b16 %v609
    %v689 = vunpack.c.h.b16 %v609
    %v690 = vunpack.c.l.b16 %v610
    %v691 = vunpack.c.h.b16 %v610
    %v692 = vunpack.c.l.b16 %v611
    %v693 = vunpack.c.h.b16 %v611
    %v694 = vunpack.c.l.b16 %v612
    %v695 = vunpack.c.h.b16 %v612
    %v696 = vunpack.c.l.b16 %v613
    %v697 = vunpack.c.h.b16 %v613
    %v698 = vunpack.c.l.b16 %v614
    %v699 = vunpack.c.h.b16 %v614
    %v700 = vunpack.c.l.b16 %v615
    %v701 = vunpack.c.h.b16 %v615
    %v702 = vunpack.c.l.b16 %v616
    %v703 = vunpack.c.h.b16 %v616
    %v704 = vunpack.c.l.b16 %v617
    %v705 = vunpack.c.h.b16 %v617
    %v706 = vunpack.c.l.b16 %v618
    %v707 = vunpack.c.h.b16 %v618
    %v708 = vunpack.c.l.b16 %v619
    %v709 = vunpack.c.h.b16 %v619
    %v710 = vunpack.c.l.b16 %v620
    %v711 = vunpack.c.h.b16 %v620
    %v712 = vunpack.c.l.b16 %v621
    %v713 = vunpack.c.h.b16 %v621
    %v714 = vunpack.c.l.b16 %v622
    %v715 = vunpack.c.h.b16 %v622
    %v716 = vunpack.c.l.b16 %v623
    %v717 = vunpack.c.h.b16 %v623
    %v718 = vunpack.c.l.b16 %v624
    %v719 = vunpack.c.h.b16 %v624
    %v720 = vunpack.c.l.b16 %v625
    %v721 = vunpack.c.h.b16 %v625
    %v722 = vpack.c.b16 %v660, %v658
    %v723 = vpack.c.b16 %v661, %v659
    %v724 = vpack.c.b16 %v664, %v662
    %v725 = vpack.c.b16 %v665, %v663
    %v726 = vpack.c.b16 %v668, %v666
    %v727 = vpack.c.b16 %v669, %v667
    %v728 = vpack.c.b16 %v672, %v670
    %v729 = vpack.c.b16 %v673, %v671
    %v730 = vpack.c.b16 %v676, %v674
    %v731 = vpack.c.b16 %v677, %v675
    %v732 = vpack.c.b16 %v680, %v678
    %v733 = vpack.c.b16 %v681, %v679
    %v734 = vpack.c.b16 %v684, %v682
    %v735 = vpack.c.b16 %v685, %v683
    %v736 = vpack.c.b16 %v688, %v686
    %v737 = vpack.c.b16 %v689, %v687
    %v738 = vpack.c.b16 %v692, %v690
    %v739 = vpack.c.b16 %v693, %v691
    %v740 = vpack.c.b16 %v696, %v694
    %v741 = vpack.c.b16 %v697, %v695
    %v742 = vpack.c.b16 %v700, %v698
    %v743 = vpack.c.b16 %v701, %v699
    %v744 = vpack.c.b16 %v704, %v702
    %v745 = vpack.c.b16 %v705, %v703
    %v746 = vpack.c.b16 %v708, %v706
    %v747 = vpack.c.b16 %v709, %v707
    %v748 = vpack.c.b16 %v712, %v710
    %v749 = vpack.c.b16 %v713, %v711
    %v750 = vpack.c.b16 %v716, %v714
    %v751 = vpack.c.b16 %v717, %v715
    %v752 = vpack.c.b16 %v720, %v718
    %v753 = vpack.c.b16 %v721, %v719
    %786 = vmatpush.bf16.msra.mxu0 %v553
    %787 = vmatpush.bf16.msra.mxu0 %v552
    %788 = vmatpush.bf16.msra.mxu0 %v551
    %789 = vmatpush.bf16.msra.mxu0 %v550
    %790 = vmatpush.bf16.msra.mxu0 %v549
    %791 = vmatpush.bf16.msra.mxu0 %v548
    %792 = vmatpush.bf16.msra.mxu0 %v547
    %793 = vmatpush.bf16.msra.mxu0 %v546
    %794 = vmatmul.bf16.gmra.mxu0 %v722
    %v795 = vpop.f32.mrf.mxu0
    %v796 = vadd.f32 0.0, %v795
    %v797 = vpop.f32.mrf.mxu0
    %v798 = vadd.f32 0.0, %v797
    %799 = vmatmul.bf16.gmra.mxu0 %v724
    %v800 = vpop.f32.mrf.mxu0
    %v801 = vadd.f32 0.0, %v800
    %v802 = vpop.f32.mrf.mxu0
    %v803 = vadd.f32 0.0, %v802
    %804 = vmatmul.bf16.gmra.mxu0 %v726
    %v805 = vpop.f32.mrf.mxu0
    %v806 = vadd.f32 0.0, %v805
    %v807 = vpop.f32.mrf.mxu0
    %v808 = vadd.f32 0.0, %v807
    %809 = vmatmul.bf16.gmra.mxu0 %v728
    %v810 = vpop.f32.mrf.mxu0
    %v811 = vadd.f32 0.0, %v810
    %v812 = vpop.f32.mrf.mxu0
    %v813 = vadd.f32 0.0, %v812
    %814 = vmatmul.bf16.gmra.mxu0 %v730
    %v815 = vpop.f32.mrf.mxu0
    %v816 = vadd.f32 0.0, %v815
    %v817 = vpop.f32.mrf.mxu0
    %v818 = vadd.f32 0.0, %v817
    %819 = vmatmul.bf16.gmra.mxu0 %v732
    %v820 = vpop.f32.mrf.mxu0
    %v821 = vadd.f32 0.0, %v820
    %v822 = vpop.f32.mrf.mxu0
    %v823 = vadd.f32 0.0, %v822
    %824 = vmatmul.bf16.gmra.mxu0 %v734
    %v825 = vpop.f32.mrf.mxu0
    %v826 = vadd.f32 0.0, %v825
    %v827 = vpop.f32.mrf.mxu0
    %v828 = vadd.f32 0.0, %v827
    %829 = vmatmul.bf16.gmra.mxu0 %v736
    %v830 = vpop.f32.mrf.mxu0
    %v831 = vadd.f32 0.0, %v830
    %v832 = vpop.f32.mrf.mxu0
    %v833 = vadd.f32 0.0, %v832
    %834 = vmatmul.bf16.gmra.mxu0 %v738
    %v835 = vpop.f32.mrf.mxu0
    %v836 = vadd.f32 0.0, %v835
    %v837 = vpop.f32.mrf.mxu0
    %v838 = vadd.f32 0.0, %v837
    %839 = vmatmul.bf16.gmra.mxu0 %v740
    %v840 = vpop.f32.mrf.mxu0
    %v841 = vadd.f32 0.0, %v840
    %v842 = vpop.f32.mrf.mxu0
    %v843 = vadd.f32 0.0, %v842
    %844 = vmatmul.bf16.gmra.mxu0 %v742
    %v845 = vpop.f32.mrf.mxu0
    %v846 = vadd.f32 0.0, %v845
    %v847 = vpop.f32.mrf.mxu0
    %v848 = vadd.f32 0.0, %v847
    %849 = vmatmul.bf16.gmra.mxu0 %v744
    %v850 = vpop.f32.mrf.mxu0
    %v851 = vadd.f32 0.0, %v850
    %v852 = vpop.f32.mrf.mxu0
    %v853 = vadd.f32 0.0, %v852
    %854 = vmatmul.bf16.gmra.mxu0 %v746
    %v855 = vpop.f32.mrf.mxu0
    %v856 = vadd.f32 0.0, %v855
    %v857 = vpop.f32.mrf.mxu0
    %v858 = vadd.f32 0.0, %v857
    %859 = vmatmul.bf16.gmra.mxu0 %v748
    %v860 = vpop.f32.mrf.mxu0
    %v861 = vadd.f32 0.0, %v860
    %v862 = vpop.f32.mrf.mxu0
    %v863 = vadd.f32 0.0, %v862
    %864 = vmatmul.bf16.gmra.mxu0 %v750
    %v865 = vpop.f32.mrf.mxu0
    %v866 = vadd.f32 0.0, %v865
    %v867 = vpop.f32.mrf.mxu0
    %v868 = vadd.f32 0.0, %v867
    %869 = vmatmul.bf16.gmra.mxu0 %v752
    %v870 = vpop.f32.mrf.mxu0
    %v871 = vadd.f32 0.0, %v870
    %v872 = vpop.f32.mrf.mxu0
    %v873 = vadd.f32 0.0, %v872
    %874 = vdwg.mxu0
    %875 = vmatpush.bf16.msra.mxu0 %v561
    %876 = vmatpush.bf16.msra.mxu0 %v560
    %877 = vmatpush.bf16.msra.mxu0 %v559
    %878 = vmatpush.bf16.msra.mxu0 %v558
    %879 = vmatpush.bf16.msra.mxu0 %v557
    %880 = vmatpush.bf16.msra.mxu0 %v556
    %881 = vmatpush.bf16.msra.mxu0 %v555
    %882 = vmatpush.bf16.msra.mxu0 %v554
    %883 = vmatmul.bf16.gmra.mxu0 %v723
    %v884 = vpop.f32.mrf.mxu0
    %v885 = vadd.f32 %v796, %v884
    %v886 = vpop.f32.mrf.mxu0
    %v887 = vadd.f32 %v798, %v886
    %888 = vmatmul.bf16.gmra.mxu0 %v725
    %v889 = vpop.f32.mrf.mxu0
    %v890 = vadd.f32 %v801, %v889
    %v891 = vpop.f32.mrf.mxu0
    %v892 = vadd.f32 %v803, %v891
    %893 = vmatmul.bf16.gmra.mxu0 %v727
    %v894 = vpop.f32.mrf.mxu0
    %v895 = vadd.f32 %v806, %v894
    %v896 = vpop.f32.mrf.mxu0
    %v897 = vadd.f32 %v808, %v896
    %898 = vmatmul.bf16.gmra.mxu0 %v729
    %v899 = vpop.f32.mrf.mxu0
    %v900 = vadd.f32 %v811, %v899
    %v901 = vpop.f32.mrf.mxu0
    %v902 = vadd.f32 %v813, %v901
    %903 = vmatmul.bf16.gmra.mxu0 %v731
    %v904 = vpop.f32.mrf.mxu0
    %v905 = vadd.f32 %v816, %v904
    %v906 = vpop.f32.mrf.mxu0
    %v907 = vadd.f32 %v818, %v906
    %908 = vmatmul.bf16.gmra.mxu0 %v733
    %v909 = vpop.f32.mrf.mxu0
    %v910 = vadd.f32 %v821, %v909
    %v911 = vpop.f32.mrf.mxu0
    %v912 = vadd.f32 %v823, %v911
    %913 = vmatmul.bf16.gmra.mxu0 %v735
    %v914 = vpop.f32.mrf.mxu0
    %v915 = vadd.f32 %v826, %v914
    %v916 = vpop.f32.mrf.mxu0
    %v917 = vadd.f32 %v828, %v916
    %918 = vmatmul.bf16.gmra.mxu0 %v737
    %v919 = vpop.f32.mrf.mxu0
    %v920 = vadd.f32 %v831, %v919
    %v921 = vpop.f32.mrf.mxu0
    %v922 = vadd.f32 %v833, %v921
    %923 = vmatmul.bf16.gmra.mxu0 %v739
    %v924 = vpop.f32.mrf.mxu0
    %v925 = vadd.f32 %v836, %v924
    %v926 = vpop.f32.mrf.mxu0
    %v927 = vadd.f32 %v838, %v926
    %928 = vmatmul.bf16.gmra.mxu0 %v741
    %v929 = vpop.f32.mrf.mxu0
    %v930 = vadd.f32 %v841, %v929
    %v931 = vpop.f32.mrf.mxu0
    %v932 = vadd.f32 %v843, %v931
    %933 = vmatmul.bf16.gmra.mxu0 %v743
    %v934 = vpop.f32.mrf.mxu0
    %v935 = vadd.f32 %v846, %v934
    %v936 = vpop.f32.mrf.mxu0
    %v937 = vadd.f32 %v848, %v936
    %938 = vmatmul.bf16.gmra.mxu0 %v745
    %v939 = vpop.f32.mrf.mxu0
    %v940 = vadd.f32 %v851, %v939
    %v941 = vpop.f32.mrf.mxu0
    %v942 = vadd.f32 %v853, %v941
    %943 = vmatmul.bf16.gmra.mxu0 %v747
    %v944 = vpop.f32.mrf.mxu0
    %v945 = vadd.f32 %v856, %v944
    %v946 = vpop.f32.mrf.mxu0
    %v947 = vadd.f32 %v858, %v946
    %948 = vmatmul.bf16.gmra.mxu0 %v749
    %v949 = vpop.f32.mrf.mxu0
    %v950 = vadd.f32 %v861, %v949
    %v951 = vpop.f32.mrf.mxu0
    %v952 = vadd.f32 %v863, %v951
    %953 = vmatmul.bf16.gmra.mxu0 %v751
    %v954 = vpop.f32.mrf.mxu0
    %v955 = vadd.f32 %v866, %v954
    %v956 = vpop.f32.mrf.mxu0
    %v957 = vadd.f32 %v868, %v956
    %958 = vmatmul.bf16.gmra.mxu0 %v753
    %v959 = vpop.f32.mrf.mxu0
    %v960 = vadd.f32 %v871, %v959
    %v961 = vpop.f32.mrf.mxu0
    %v962 = vadd.f32 %v873, %v961
    %963 = vdwg.mxu0
    %v964 = vadd.f32 %v562, %v885
    %v965 = vadd.f32 %v563, %v887
    %v966 = vadd.f32 %v564, %v890
    %v967 = vadd.f32 %v565, %v892
    %v968 = vadd.f32 %v566, %v895
    %v969 = vadd.f32 %v567, %v897
    %v970 = vadd.f32 %v568, %v900
    %v971 = vadd.f32 %v569, %v902
    %v972 = vadd.f32 %v570, %v905
    %v973 = vadd.f32 %v571, %v907
    %v974 = vadd.f32 %v572, %v910
    %v975 = vadd.f32 %v573, %v912
    %v976 = vadd.f32 %v574, %v915
    %v977 = vadd.f32 %v575, %v917
    %v978 = vadd.f32 %v576, %v920
    %v979 = vadd.f32 %v577, %v922
    %v980 = vadd.f32 %v578, %v925
    %v981 = vadd.f32 %v579, %v927
    %v982 = vadd.f32 %v580, %v930
    %v983 = vadd.f32 %v581, %v932
    %v984 = vadd.f32 %v582, %v935
    %v985 = vadd.f32 %v583, %v937
    %v986 = vadd.f32 %v584, %v940
    %v987 = vadd.f32 %v585, %v942
    %v988 = vadd.f32 %v586, %v945
    %v989 = vadd.f32 %v587, %v947
    %v990 = vadd.f32 %v588, %v950
    %v991 = vadd.f32 %v589, %v952
    %v992 = vadd.f32 %v590, %v955
    %v993 = vadd.f32 %v591, %v957
    %v994 = vadd.f32 %v592, %v960
    %v995 = vadd.f32 %v593, %v962
    %996 = vst [vmem:[#allocation8] sm:$0xff] %v964
    %997 = vst [vmem:[#allocation8 + $0x8] sm:$0xff] %v965
    %998 = vst [vmem:[#allocation8 + $0x10] sm:$0xff] %v966
    %999 = vst [vmem:[#allocation8 + $0x18] sm:$0xff] %v967
    %1000 = vst [vmem:[#allocation8 + $0x20] sm:$0xff] %v968
    %1001 = vst [vmem:[#allocation8 + $0x28] sm:$0xff] %v969
    %1002 = vst [vmem:[#allocation8 + $0x30] sm:$0xff] %v970
    %1003 = vst [vmem:[#allocation8 + $0x38] sm:$0xff] %v971
    %1004 = vst [vmem:[#allocation8 + $0x40] sm:$0xff] %v972
    %1005 = vst [vmem:[#allocation8 + $0x48] sm:$0xff] %v973
    %1006 = vst [vmem:[#allocation8 + $0x50] sm:$0xff] %v974
    %1007 = vst [vmem:[#allocation8 + $0x58] sm:$0xff] %v975
    %1008 = vst [vmem:[#allocation8 + $0x60] sm:$0xff] %v976
    %1009 = vst [vmem:[#allocation8 + $0x68] sm:$0xff] %v977
    %1010 = vst [vmem:[#allocation8 + $0x70] sm:$0xff] %v978
    %1011 = vst [vmem:[#allocation8 + $0x78] sm:$0xff] %v979
    %1012 = vst [vmem:[#allocation8 + $0x80] sm:$0xff] %v980
    %1013 = vst [vmem:[#allocation8 + $0x88] sm:$0xff] %v981
    %1014 = vst [vmem:[#allocation8 + $0x90] sm:$0xff] %v982
    %1015 = vst [vmem:[#allocation8 + $0x98] sm:$0xff] %v983
    %1016 = vst [vmem:[#allocation8 + $0xa0] sm:$0xff] %v984
    %1017 = vst [vmem:[#allocation8 + $0xa8] sm:$0xff] %v985
    %1018 = vst [vmem:[#allocation8 + $0xb0] sm:$0xff] %v986
    %1019 = vst [vmem:[#allocation8 + $0xb8] sm:$0xff] %v987
    %1020 = vst [vmem:[#allocation8 + $0xc0] sm:$0xff] %v988
    %1021 = vst [vmem:[#allocation8 + $0xc8] sm:$0xff] %v989
    %1022 = vst [vmem:[#allocation8 + $0xd0] sm:$0xff] %v990
    %1023 = vst [vmem:[#allocation8 + $0xd8] sm:$0xff] %v991
    %1024 = vst [vmem:[#allocation8 + $0xe0] sm:$0xff] %v992
    %1025 = vst [vmem:[#allocation8 + $0xe8] sm:$0xff] %v993
    %1026 = vst [vmem:[#allocation8 + $0xf0] sm:$0xff] %v994
    %1027 = vst [vmem:[#allocation8 + $0xf8] sm:$0xff] %v995
    // Predicated region
    $region30: #{_dynamics_impl.1} parent=1 // pred_check
      _
    $region31: #{_dynamics_impl.1} parent=1 // pred_check_branch
      %1029 = sbr.rel (0) target = $region33
    $region32: #{_dynamics_impl.1} parent=1 // pred_region
      %1031 = vsyncadd [#allocation4], 0
      %s1032 = sshll.u32 [#allocation8], 4
      %s1033 = int_to_ptr.vmem [resolvable:$true] %s1032
      %s1034 = sshll.u32 %s3, 4
      %s1035 = int_to_ptr.hbm [resolvable:$true] %s1034
      %1040 = dma.vmem_to_hbm [thread:$0]  %s1033, 4096, %s1035, [#allocation4], 128, 128, 8
    $region33: #{_dynamics_impl.1} parent=1 // pred_fallthru
      _
    // Predicated region
    $region34: #{_dynamics_impl.1} parent=1 // pred_check
      _
    $region35: #{_dynamics_impl.1} parent=1 // pred_check_branch
      %1042 = sbr.rel (0) target = $region37
    $region36: #{_dynamics_impl.1} parent=1 // pred_region
      %1044 = dma.done [#allocation4], 4096
    $region37: #{_dynamics_impl.1} parent=1 // pred_fallthru
      _
    %1045 = vsyncpa [#allocation3], 1
    %1046 = vsyncpa [#allocation6], 1
    %1047 = vsyncpa [#allocation4], 1

</llo_original>
